<compile_context>
chip_gen: v7x
topology: tpu7x:2x2x1
jax: 0.10.0
libtpu: 0.0.40
codegen_flags: <defaults>
</compile_context>

<pallas_src>
import math
import functools

import jax
import jax.numpy as jnp
from jax.experimental import pallas as pl
from jax.experimental.pallas import tpu as pltpu


def _round_up(x, m):
    return ((x + m - 1) // m) * m


def _gmm_potential_kernel(xT_ref, mu_ref, c_ref, o_ref, *, beta, gamma):
    """One batch tile of U(x) = -(1/beta) * logsumexp_k(c_k + gamma*x.mu_k) + (gamma/(2*beta))*||x||^2.

    xT_ref : [D, TB]  latent points, batch on the lane axis (VMEM)
    mu_ref : [K, D]   GMM centers (VMEM, grid-invariant)
    c_ref  : [K, 1]   folded per-component constants, f32 (VMEM, grid-invariant)
    o_ref  : [1, TB]  potential per sample (VMEM, lane-dense)
    """
    xT = xT_ref[...]                                  # [D, TB], native dtype
    mu = mu_ref[...]                                  # [K, D],  native dtype
    c = c_ref[...]                                    # [K, 1],  f32

    # MXU: [K, D] @ [D, TB] -> [K, TB], f32 accumulate. No in-kernel transpose.
    xmu = jnp.dot(mu, xT, preferred_element_type=jnp.float32)

    # ||x||^2 per sample (constant over k, so it is pulled out of the logsumexp).
    xf = xT.astype(jnp.float32)
    x2 = jnp.sum(xf * xf, axis=0, keepdims=True)      # [1, TB]

    logits = c + gamma * xmu                          # [K, TB]

    # logsumexp over components (sublane axis K).
    m = jnp.max(logits, axis=0, keepdims=True)        # [1, TB]
    lse = m + jnp.log(jnp.sum(jnp.exp(logits - m), axis=0, keepdims=True))
    lse = lse - 0.5 * gamma * x2                      # [1, TB]

    o_ref[...] = (-1.0 / beta) * lse


def prior_model_forward(x0, centers, weight_logits, *, beta, gamma, block_b=2048):
    """Prior_Model.forward(x0) -> potential U(x0) of shape [B]."""
    B, D = x0.shape
    K, Dc = centers.shape
    assert Dc == D

    beta = float(beta)
    gamma = float(gamma)

    # --- plain-JAX glue: fold all per-component constants -------------------
    mu32 = centers.astype(jnp.float32)
    logw = jax.nn.log_softmax(weight_logits.astype(jnp.float32))          # [K]
    log_norm = -0.5 * D * math.log(2.0 * math.pi / gamma)
    mu2 = jnp.sum(mu32 * mu32, axis=-1)                                   # [K]
    c = (logw + log_norm - 0.5 * gamma * mu2).reshape(K, 1)               # [K,1] f32

    # --- layout plumbing: batch on the lane axis, padded to the tile --------
    xT = x0.T                                                             # [D, B]
    TB = min(int(block_b), _round_up(B, 128))
    TB = _round_up(TB, 128)
    B_pad = _round_up(B, TB)
    if B_pad != B:
        xT = jnp.pad(xT, ((0, 0), (0, B_pad - B)))

    kernel = functools.partial(_gmm_potential_kernel, beta=beta, gamma=gamma)

    itemsize = jnp.dtype(x0.dtype).itemsize
    cost = pl.CostEstimate(
        flops=2 * B_pad * K * D + 4 * B_pad * K,
        transcendentals=B_pad * (K + 1),
        bytes_accessed=B_pad * D * itemsize + B_pad * 4 + K * D * itemsize + K * 4,
    )

    out = pl.pallas_call(
        kernel,
        out_shape=jax.ShapeDtypeStruct((1, B_pad), jnp.float32),
        grid_spec=pl.GridSpec(
            grid=(B_pad // TB,),
            in_specs=[
                pl.BlockSpec((D, TB), lambda i: (0, i)),   # x tile (pipelined)
                pl.BlockSpec((K, D), lambda i: (0, 0)),    # centers (grid-invariant)
                pl.BlockSpec((K, 1), lambda i: (0, 0)),    # folded constants
            ],
            out_specs=pl.BlockSpec((1, TB), lambda i: (0, i)),
        ),
        compiler_params=pltpu.CompilerParams(
            dimension_semantics=("parallel",),
        ),
        cost_estimate=cost,
    )(xT, centers, c)

    return out[0, :B]                                                     # [B]


def _reference(x0, centers, weight_logits, beta, gamma):
    D = x0.shape[-1]
    logw = jax.nn.log_softmax(weight_logits.astype(jnp.float32))
    diff = x0.astype(jnp.float32)[:, None, :] - centers.astype(jnp.float32)[None, :, :]
    sq = jnp.sum(diff * diff, axis=-1)                                    # [B, K]
    log_norm = -0.5 * D * math.log(2.0 * math.pi / gamma)
    logits = logw[None, :] + log_norm - 0.5 * gamma * sq
    return (-1.0 / beta) * jax.nn.logsumexp(logits, axis=-1)


if __name__ == "__main__":
    # Hyperparameters matching the module's __init__ (args.*):
    latent_dim = 16      # args.latent_dim
    component_num = 8    # args.component_num
    beta = 1.0           # args.beta
    gamma = 2.0          # args.gamma
    batch = 8            # small, deliberately not a multiple of 128 (exercises padding)

    key = jax.random.PRNGKey(0)
    k_x, k_mu, k_w = jax.random.split(key, 3)

    x0 = jax.random.normal(k_x, (batch, latent_dim), dtype=jnp.float32)
    centers = jax.random.normal(k_mu, (component_num, latent_dim), dtype=jnp.float32)
    weight_logits = 0.1 * jax.random.normal(k_w, (component_num,), dtype=jnp.float32)

    out = prior_model_forward(x0, centers, weight_logits, beta=beta, gamma=gamma)
    out = jax.block_until_ready(out)

    ref = _reference(x0, centers, weight_logits, beta, gamma)
    assert out.shape == (batch,), out.shape
    assert jnp.allclose(out, ref, atol=1e-4, rtol=1e-4), (out, ref)

    print("KERNEL_OK")
</pallas_src>

<mosaic_0001>
module attributes {stable_mosaic.version = 11 : i64} {
  func.func @_gmm_potential_kernel(%arg0: i32, %arg1: memref<16x128xf32, #tpu.memory_space<vmem>>, %arg2: memref<8x16xf32, #tpu.memory_space<vmem>>, %arg3: memref<8x1xf32, #tpu.memory_space<vmem>>, %arg4: memref<1x128xf32, #tpu.memory_space<vmem>>) attributes {dimension_semantics = [#tpu.dimension_semantics<parallel>], iteration_bounds = array<i64: 1>, scalar_prefetch = 0 : i64, scratch_operands = 0 : i64, tpu.core_type = #tpu.core_type<tc>, window_params = [{transform_indices = @transform_0, window_bounds = array<i64: 16, 128>}, {pipeline_mode = #tpu.pipeline_mode<synchronous>, transform_indices = @transform_1, window_bounds = array<i64: 8, 16>}, {pipeline_mode = #tpu.pipeline_mode<synchronous>, transform_indices = @transform_2, window_bounds = array<i64: 8, 1>}, {transform_indices = @transform_3, window_bounds = array<i64: 1, 128>}]} {
    %c0 = arith.constant 0 : index
    %c0_0 = arith.constant 0 : index
    %0 = vector.load %arg1[%c0, %c0_0] : memref<16x128xf32, #tpu.memory_space<vmem>>, vector<16x128xf32>
    %c0_1 = arith.constant 0 : index
    %c0_2 = arith.constant 0 : index
    %1 = vector.load %arg2[%c0_1, %c0_2] : memref<8x16xf32, #tpu.memory_space<vmem>>, vector<8x16xf32>
    %c0_3 = arith.constant 0 : index
    %c0_4 = arith.constant 0 : index
    %2 = vector.load %arg3[%c0_3, %c0_4] : memref<8x1xf32, #tpu.memory_space<vmem>>, vector<8x1xf32>
    %cst = arith.constant dense<0.000000e+00> : vector<8x128xf32>
    %3 = tpu.matmul %1, %0, %cst {dimension_numbers = #tpu.dot_dimension_numbers<[1], [0], [0], [1], [0, 0, 1, 1], [], []>} : vector<8x16xf32>, vector<16x128xf32>, vector<8x128xf32> -> vector<8x128xf32>
    %4 = arith.mulf %0, %0 : vector<16x128xf32>
    %cst_5 = arith.constant dense<0.000000e+00> : vector<128xf32>
    %5 = vector.multi_reduction <add>, %4, %cst_5 [0] : vector<16x128xf32> to vector<128xf32>
    %6 = vector.shape_cast %5 : vector<128xf32> to vector<1x128xf32>
    %cst_6 = arith.constant 2.000000e+00 : f32
    %7 = vector.broadcast %cst_6 : f32 to vector<8x128xf32>
    %8 = arith.mulf %7, %3 : vector<8x128xf32>
    %9 = vector.broadcast %2 : vector<8x1xf32> to vector<8x128xf32>
    %10 = arith.addf %9, %8 : vector<8x128xf32>
    %cst_7 = arith.constant dense<0xFF800000> : vector<128xf32>
    %11 = vector.multi_reduction <maximumf>, %10, %cst_7 [0] : vector<8x128xf32> to vector<128xf32>
    %12 = vector.shape_cast %11 : vector<128xf32> to vector<1x128xf32>
    %13 = vector.broadcast %12 : vector<1x128xf32> to vector<8x128xf32>
    %14 = arith.subf %10, %13 : vector<8x128xf32>
    %15 = math.exp %14 : vector<8x128xf32>
    %cst_8 = arith.constant dense<0.000000e+00> : vector<128xf32>
    %16 = vector.multi_reduction <add>, %15, %cst_8 [0] : vector<8x128xf32> to vector<128xf32>
    %17 = vector.shape_cast %16 : vector<128xf32> to vector<1x128xf32>
    %18 = math.log %17 : vector<1x128xf32>
    %19 = arith.addf %12, %18 : vector<1x128xf32>
    %cst_9 = arith.constant 1.000000e+00 : f32
    %20 = vector.broadcast %cst_9 : f32 to vector<1x128xf32>
    %21 = arith.mulf %20, %6 : vector<1x128xf32>
    %22 = arith.subf %19, %21 : vector<1x128xf32>
    %cst_10 = arith.constant -1.000000e+00 : f32
    %23 = vector.broadcast %cst_10 : f32 to vector<1x128xf32>
    %24 = arith.mulf %23, %22 : vector<1x128xf32>
    %c0_11 = arith.constant 0 : index
    %c0_12 = arith.constant 0 : index
    %25 = vector.load %arg4[%c0_11, %c0_12] : memref<1x128xf32, #tpu.memory_space<vmem>>, vector<1x128xf32>
    tpu.vector_store %arg4[%c0_11, %c0_12], %24 {strides = array<i32>} : memref<1x128xf32, #tpu.memory_space<vmem>>, vector<1x128xf32>,
    return
  }
  func.func @transform_0(%arg0: i32) -> (i32, i32) {
    %c0_i32 = arith.constant 0 : i32
    %c0_i32_0 = arith.constant 0 : i32
    return %c0_i32, %arg0 : i32, i32
  }
  func.func @transform_1(%arg0: i32) -> (i32, i32) {
    %c0_i32 = arith.constant 0 : i32
    %c0_i32_0 = arith.constant 0 : i32
    %c0_i32_1 = arith.constant 0 : i32
    return %c0_i32, %c0_i32_0 : i32, i32
  }
  func.func @transform_2(%arg0: i32) -> (i32, i32) {
    %c0_i32 = arith.constant 0 : i32
    %c0_i32_0 = arith.constant 0 : i32
    %c0_i32_1 = arith.constant 0 : i32
    return %c0_i32, %c0_i32_0 : i32, i32
  }
  func.func @transform_3(%arg0: i32) -> (i32, i32) {
    %c0_i32 = arith.constant 0 : i32
    %c0_i32_0 = arith.constant 0 : i32
    return %c0_i32, %arg0 : i32, i32
  }
}

</mosaic_0001>

<llo_original>
// kernel: tpu_custom_call.1
$region0: #{tpu_custom_call.1}
  #allocation0 [shape = 'u32[]', space=smem, size = 0x4, offset = 0x4, fixed_abs, tag = 'smem constant byte address 0x4 - core index']
  #allocation1 [shape = 'u32[144,128]{1,0:T(1,128)}', space=vmem, size = 0x12000, scoped, tag = 'internal scratch']
  %s0 = inlined_call_operand.hbm [shape: f32[16,128], index: 0, kind: input, shape index: {}]
  %s1 = inlined_call_operand.vmem [shape: f32[8,16], index: 1, kind: input, shape index: {}]
  %s2 = inlined_call_operand.vmem [shape: f32[8,1], index: 2, kind: input, shape index: {}]
  %s3 = inlined_call_operand.hbm [shape: f32[1,128], index: 3, kind: output, shape index: {}]
  %s4 = sld [smem:[#allocation0]]
  $region26: #{tpu_custom_call.1} parent=0
    _
  %s6 = ssub.s32 1, %s4
  %s7 = scalar_select 0, %s6, %s4
  $region1: #{tpu_custom_call.1} parent=0
    #allocation2 [shape = 'u8[8192]{0}', space=vmem, size = 0x2000, scoped, tag = 'input window, operand 0, single buffered']
    #allocation3 [shape = 's32[1]{0}', space=sflag, size = 0x4, scoped, tag = 'scoped memory for tpu_custom_call.1']
    #allocation4 [shape = 's32[1]{0}', space=sflag, size = 0x4, scoped, tag = 'scoped memory for tpu_custom_call.1']
    #allocation5 [shape = 'u8[512]{0}', space=vmem, size = 0x400, scoped, tag = 'output window, operand 0, single buffered']
    %8 = vsyncpa [#allocation3], 0
    %9 = vsyncpa [#allocation4], 0
    // Predicated region
    $region2: #{tpu_custom_call.1} parent=1 // pred_check
      _
    $region3: #{tpu_custom_call.1} parent=1 // pred_check_branch
      %11 = sbr.rel (0) target = $region5
    $region4: #{tpu_custom_call.1} parent=1 // pred_region
      %s13 = ssub.s32 256, 256
      %14 = vsyncadd [#allocation3], %s13
      %s15 = sshll.u32 [#allocation2], 4
      %s16 = int_to_ptr.vmem [resolvable:$true] %s15
      %21 = dma.hbm_to_vmem [thread:$0]  %s0, 256, %s16, [#allocation3], 128, 128, 8
    $region5: #{tpu_custom_call.1} parent=1 // pred_fallthru
      _
    // Predicated region
    $region6: #{tpu_custom_call.1} parent=1 // pred_check
      _
    $region7: #{tpu_custom_call.1} parent=1 // pred_check_branch
      %23 = sbr.rel (0) target = $region9
    $region8: #{tpu_custom_call.1} parent=1 // pred_region
      _
    $region9: #{tpu_custom_call.1} parent=1 // pred_fallthru
      _
    // Predicated region
    $region10: #{tpu_custom_call.1} parent=1 // pred_check
      _
    $region11: #{tpu_custom_call.1} parent=1 // pred_check_branch
      %25 = sbr.rel (0) target = $region13
    $region12: #{tpu_custom_call.1} parent=1 // pred_region
      _
    $region13: #{tpu_custom_call.1} parent=1 // pred_fallthru
      _
    // Predicated region
    $region14: #{tpu_custom_call.1} parent=1 // pred_check
      _
    $region15: #{tpu_custom_call.1} parent=1 // pred_check_branch
      %27 = sbr.rel (0) target = $region17
    $region16: #{tpu_custom_call.1} parent=1 // pred_region
      %28 = dma.done [#allocation3], 256
    $region17: #{tpu_custom_call.1} parent=1 // pred_fallthru
      _
    %v29 = vld [vmem:[#allocation2] sm:$0xff]
    %v30 = vld [vmem:[#allocation2 + $0x8] sm:$0xff]
    %v31 = vld [vmem:[%s1] sm:$0xff]
    %v32 = vld [vmem:[%s2] sm:$0xff]
    %vm33 = vcmask 130048
    %v35 = vsel %vm33, %v31, 0
    %37 = vmatprep.subr.mxu0 0.0
    %38 = vmatpush1.msra.mxu0 %v29
    %39 = vmatprep.subr.mxu0 0.0
    %40 = vmatpush1.msra.mxu0 %v30
    %41 = vmatprep.subr.mxu0 0.0
    %42 = vmatpush1.msra.mxu0 0.0
    %43 = vmatprep.subr.mxu0 0.0
    %44 = vmatpush1.msra.mxu0 0.0
    %45 = vmatprep.subr.mxu0 0.0
    %46 = vmatpush1.msra.mxu0 0.0
    %47 = vmatprep.subr.mxu0 0.0
    %48 = vmatpush1.msra.mxu0 0.0
    %49 = vmatprep.subr.mxu0 0.0
    %50 = vmatpush1.msra.mxu0 0.0
    %51 = vmatprep.subr.mxu0 0.0
    %52 = vmatpush1.msra.mxu0 0.0
    %53 = vmatprep.subr.mxu0 0.0
    %54 = vmatpush1.msra.mxu0 0.0
    %55 = vmatprep.subr.mxu0 0.0
    %56 = vmatpush1.msra.mxu0 0.0
    %57 = vmatprep.subr.mxu0 0.0
    %58 = vmatpush1.msra.mxu0 0.0
    %59 = vmatprep.subr.mxu0 0.0
    %60 = vmatpush1.msra.mxu0 0.0
    %61 = vmatprep.subr.mxu0 0.0
    %62 = vmatpush1.msra.mxu0 0.0
    %63 = vmatprep.subr.mxu0 0.0
    %64 = vmatpush1.msra.mxu0 0.0
    %65 = vmatprep.subr.mxu0 0.0
    %66 = vmatpush1.msra.mxu0 0.0
    %67 = vmatprep.subr.mxu0 0.0
    %68 = vmatpush1.msra.mxu0 0.0
    %69 = vmatprep.subr.mxu0 0.0
    %70 = vmatpush1.msra.mxu0 0.0
    %71 = vmatprep.subr.mxu0 0.0
    %72 = vmatpush1.msra.mxu0 0.0
    %73 = vmatprep.subr.mxu0 0.0
    %74 = vmatpush1.msra.mxu0 0.0
    %75 = vmatprep.subr.mxu0 0.0
    %76 = vmatpush1.msra.mxu0 0.0
    %77 = vmatprep.subr.mxu0 0.0
    %78 = vmatpush1.msra.mxu0 0.0
    %79 = vmatprep.subr.mxu0 0.0
    %80 = vmatpush1.msra.mxu0 0.0
    %81 = vmatprep.subr.mxu0 0.0
    %82 = vmatpush1.msra.mxu0 0.0
    %83 = vmatprep.subr.mxu0 0.0
    %84 = vmatpush1.msra.mxu0 0.0
    %85 = vmatprep.subr.mxu0 0.0
    %86 = vmatpush1.msra.mxu0 0.0
    %87 = vmatprep.subr.mxu0 0.0
    %88 = vmatpush1.msra.mxu0 0.0
    %89 = vmatprep.subr.mxu0 0.0
    %90 = vmatpush1.msra.mxu0 0.0
    %91 = vmatprep.subr.mxu0 0.0
    %92 = vmatpush1.msra.mxu0 0.0
    %93 = vmatprep.subr.mxu0 0.0
    %94 = vmatpush1.msra.mxu0 0.0
    %95 = vmatprep.subr.mxu0 0.0
    %96 = vmatpush1.msra.mxu0 0.0
    %97 = vmatprep.subr.mxu0 0.0
    %98 = vmatpush1.msra.mxu0 0.0
    %99 = vmatprep.subr.mxu0 0.0
    %100 = vmatpush1.msra.mxu0 0.0
    %101 = vmatprep.mubr.f32.mxu0 0.0
    %102 = vmatmul.mubr.f32.gmra.mrb[0].mxu0 %v35
    %v103 = vpop.f32.mrb[0].mxu0
    %v104 = vadd.f32 0.0, %v103
    %v105 = vpop.f32.mrb[0].mxu0
    %106 = vdwg.mxu0
    %v107 = vmul.f32 %v29, %v29
    %v108 = vmul.f32 %v30, %v30
    %v109 = vadd.f32 %v107, %v108
    %v110 = vrot.slane %v109, 4
    %v111 = vadd.f32 %v109, %v110
    %v112 = vrot.slane %v111, 2
    %v113 = vadd.f32 %v111, %v112
    %v114 = vrot.slane %v113, 1
    %v115 = vadd.f32 %v113, %v114
    %v116 = vmul.f32 %v104, 2.0
    %118 = vset.pattern.permute.xlu0 0
    %119 = vperm.xlu0 %118, %v32
    %v120 = vpop.permute.xlu0 %119
    %v122 = vadd.f32 %v120, %v116
    %v123 = vrot.slane %v122, 4
    %v124 = vmax.f32 %v122, %v123
    %v125 = vrot.slane %v124, 2
    %v126 = vmax.f32 %v124, %v125
    %v127 = vrot.slane %v126, 1
    %v128 = vmax.f32 %v126, %v127
    %v129 = vsub.f32 %v122, %v128
    %v130 = vmul.f32 %v129, 1.442695
    %v131 = vpow.pop %v130
    %v132 = vrot.slane %v131, 4
    %v133 = vadd.f32 %v131, %v132
    %v134 = vrot.slane %v133, 2
    %v135 = vadd.f32 %v133, %v134
    %v136 = vrot.slane %v135, 1
    %v137 = vadd.f32 %v135, %v136
    %v138 = vlog2.pop %v137
    %v139 = vmul.f32 %v138, 0.6931472
    %v140 = vadd.f32 %v128, %v139
    %v141 = vsub.f32 %v140, %v115
    %v142 = vmul.f32 %v141, -1.0
    %143 = vst [vmem:[#allocation5] sm:$0x1] %v142
    // Predicated region
    $region18: #{tpu_custom_call.1} parent=1 // pred_check
      _
    $region19: #{tpu_custom_call.1} parent=1 // pred_check_branch
      %145 = sbr.rel (0) target = $region21
    $region20: #{tpu_custom_call.1} parent=1 // pred_region
      %s147 = ssub.s32 16, 16
      %148 = vsyncadd [#allocation4], %s147
      %s150 = sshll.u32 [#allocation5], 4
      %s151 = int_to_ptr.vmem [resolvable:$true] %s150
      %153 = dma.vmem_to_hbm [thread:$0]  %s151, 16, %s3, [#allocation4]
    $region21: #{tpu_custom_call.1} parent=1 // pred_fallthru
      _
    // Predicated region
    $region22: #{tpu_custom_call.1} parent=1 // pred_check
      _
    $region23: #{tpu_custom_call.1} parent=1 // pred_check_branch
      %155 = sbr.rel (0) target = $region25
    $region24: #{tpu_custom_call.1} parent=1 // pred_region
      %156 = dma.done [#allocation4], 16
    $region25: #{tpu_custom_call.1} parent=1 // pred_fallthru
      _
    %157 = vsyncpa [#allocation3], 1
    %158 = vsyncpa [#allocation4], 1

</llo_original>
